<compile_context>
chip_gen: v7x
topology: tpu7x:2x2x1
jax: 0.10.0
libtpu: 0.0.40
codegen_flags: <defaults>
</compile_context>

<pallas_src>
import functools

import numpy as np

import jax
import jax.numpy as jnp
from jax import lax
from jax.experimental import pallas as pl
from jax.experimental.pallas import tpu as pltpu


def _fused_basicblock_kernel(x_ref, w1_ref, b1_ref, w2_ref, b2_ref,
                             out_ref, xh_ref, mid_ref):
  """Fused conv1+bn1+relu+conv2+bn2+residual+relu for B_TILE images."""
  B, H, WC = x_ref.shape
  BH = B * H

  # Zero the per-image halo rows (rows 0 and H+1) of both scratches.  Done
  # every step (cheap) — see header note on why not pl.when(program_id == 0).
  zrow = jnp.zeros((B, 1, WC), xh_ref.dtype)
  xh_ref[:, 0:1, :] = zrow
  xh_ref[:, H + 1:H + 2, :] = zrow
  mid_ref[:, 0:1, :] = zrow
  mid_ref[:, H + 1:H + 2, :] = zrow

  # Input block stays f32 in VMEM (exact residual); MXU operand is cast once.
  x = x_ref[...]                                          # (B, H, WC)
  xh_ref[:, 1:H + 1, :] = x.astype(xh_ref.dtype)

  # ---- conv1 (+ BN1: scale folded into w1, bias inits the accumulator) + ReLU
  acc = jnp.broadcast_to(b1_ref[...], (BH, WC))           # f32 accumulator
  for kh in range(3):                                     # kw taps + horizontal
    tap = xh_ref[:, kh:kh + H, :].reshape(BH, WC)         # zero-padding encoded
    acc = acc + jnp.dot(tap, w1_ref[kh],                  # in the banded weight
                        preferred_element_type=jnp.float32)
  h = jnp.maximum(acc, 0.0)                               # (BH, WC) f32

  # Intermediate activation lives in VMEM, already in matmul operand dtype.
  mid_ref[:, 1:H + 1, :] = h.reshape(B, H, WC).astype(mid_ref.dtype)

  # ---- conv2 (+ BN2 folded) + residual add (f32) + ReLU
  acc2 = jnp.broadcast_to(b2_ref[...], (BH, WC))
  for kh in range(3):
    tap = mid_ref[:, kh:kh + H, :].reshape(BH, WC)
    acc2 = acc2 + jnp.dot(tap, w2_ref[kh],
                          preferred_element_type=jnp.float32)
  identity = x.reshape(BH, WC).astype(jnp.float32)        # exact f32 skip
  out = jnp.maximum(acc2 + identity, 0.0)
  out_ref[...] = out.reshape(B, H, WC).astype(out_ref.dtype)


def _pick_batch_tile(N, H):
  """Batch tile so matmul M = B_TILE*H ~ 256, but keep >= 2 grid steps (v7x)."""
  cdiv = lambda a, b: -(-a // b)
  bt = max(1, min(32, cdiv(256, H)))
  bt = min(bt, N)
  while N >= 2 and cdiv(N, bt) < 2 and bt > 1:
    bt = cdiv(bt, 2)
  return bt


def basic_block_forward(x_nchw, params, compute_dtype=jnp.bfloat16,
                        out_dtype=None, batch_tile=None):
  """BasicBlock forward (stride=1, downsample=None). NCHW I/O like PyTorch."""
  N, C, H, W = x_nchw.shape
  WC = W * C
  out_dtype = x_nchw.dtype if out_dtype is None else out_dtype

  # NCHW -> NHWC -> lane-dense (N, H, W*C).  No row padding here: the vertical
  # halo is built inside the kernel, saving a full HBM pass over x.
  x = jnp.transpose(x_nchw, (0, 2, 3, 1)).reshape(N, H, WC)

  bt = batch_tile if batch_tile is not None else _pick_batch_tile(N, H)
  n_blocks = -(-N // bt)
  Np = n_blocks * bt
  if Np != N:
    x = jnp.pad(x, ((0, Np - N), (0, 0), (0, 0)))

  w1 = params["w1"].astype(compute_dtype)                 # (3, WC, WC) banded
  w2 = params["w2"].astype(compute_dtype)
  b1 = params["b1"]                                       # (1, WC) f32
  b2 = params["b2"]

  # True conv FLOPs (2 convs, 3x3, Cin=Cout=C), not zero-padded banded FLOPs.
  flops = 2 * Np * H * W * (2 * 9 * C * C)
  bytes_accessed = (int(x.size) * x.dtype.itemsize
                    + Np * H * WC * jnp.dtype(out_dtype).itemsize
                    + int(w1.size) * w1.dtype.itemsize
                    + int(w2.size) * w2.dtype.itemsize
                    + int(b1.size) * b1.dtype.itemsize
                    + int(b2.size) * b2.dtype.itemsize)

  out2d = pl.pallas_call(
      _fused_basicblock_kernel,
      out_shape=jax.ShapeDtypeStruct((Np, H, WC), out_dtype),
      grid_spec=pltpu.PrefetchScalarGridSpec(
          num_scalar_prefetch=0,
          grid=(n_blocks,),
          in_specs=[
              pl.BlockSpec((bt, H, WC), lambda n: (n, 0, 0)),    # input (f32)
              pl.BlockSpec((3, WC, WC), lambda n: (0, 0, 0)),    # w1 (banded)
              pl.BlockSpec((1, WC), lambda n: (0, 0)),           # bias1
              pl.BlockSpec((3, WC, WC), lambda n: (0, 0, 0)),    # w2 (banded)
              pl.BlockSpec((1, WC), lambda n: (0, 0)),           # bias2
          ],
          out_specs=pl.BlockSpec((bt, H, WC), lambda n: (n, 0, 0)),
          scratch_shapes=[
              pltpu.VMEM((bt, H + 2, WC), compute_dtype),        # x + halo
              pltpu.VMEM((bt, H + 2, WC), compute_dtype),        # mid + halo
          ],
      ),
      compiler_params=pltpu.CompilerParams(
          dimension_semantics=("parallel",)),
      cost_estimate=pl.CostEstimate(
          flops=int(flops), transcendentals=0,
          bytes_accessed=int(bytes_accessed)),
  )(x, w1, b1, w2, b2)

  out = out2d[:N].reshape(N, H, W, C)
  return jnp.transpose(out, (0, 3, 1, 2))                 # NHWC -> NCHW


def _banded_conv3x3_weight(w_oihw, scale, W):
  """Fold BN scale into a 3x3 conv weight and lay it out as 3 banded
  (W*Cin, W*Cout) matrices (one per kh tap).  The kw taps and the horizontal
  zero padding are encoded by the band structure."""
  Cout, Cin, KH, KW = w_oihw.shape
  w = w_oihw * scale[:, None, None, None]                 # fold BN scale
  wb = np.zeros((KH, W * Cin, W * Cout), np.float32)
  for kh in range(KH):
    for kw in range(KW):
      blk = w[:, :, kh, kw].T                             # (Cin, Cout)
      for j in range(W):                                  # output column
        jj = j + kw - 1                                   # input column (pad=1)
        if 0 <= jj < W:
          wb[kh, jj * Cin:(jj + 1) * Cin, j * Cout:(j + 1) * Cout] = blk
  return wb


def prepare_basic_block_params(w1_oihw, bn1, w2_oihw, bn2, W, eps=1e-5):
  """Host-side prep: fold eval-mode BN into conv weights/biases and build the
  banded, lane-dense weight layout consumed by the kernel."""

  def fold(w_oihw, bn_params):
    g, b, m, v = (np.asarray(t, np.float32) for t in bn_params)
    scale = g / np.sqrt(v + eps)
    bias = b - m * scale
    wb = _banded_conv3x3_weight(np.asarray(w_oihw, np.float32), scale, W)
    bias_tiled = np.tile(bias, W)[None, :]                # lane j*C+c -> bias[c]
    return jnp.asarray(wb), jnp.asarray(bias_tiled)

  w1b, b1t = fold(w1_oihw, bn1)
  w2b, b2t = fold(w2_oihw, bn2)
  return dict(w1=w1b, b1=b1t, w2=w2b, b2=b2t)


def _reference_forward(x_nchw, w1_oihw, bn1, w2_oihw, bn2, eps=1e-5):
  """Pure-JAX reference (lax conv, eval-mode BN) for correctness checking."""
  x = jnp.transpose(x_nchw, (0, 2, 3, 1))
  dn = ("NHWC", "HWIO", "NHWC")

  def conv(inp, w_oihw):
    w_hwio = jnp.transpose(w_oihw, (2, 3, 1, 0))
    return lax.conv_general_dilated(inp, w_hwio, (1, 1), ((1, 1), (1, 1)),
                                    dimension_numbers=dn)

  def bn(y, p):
    g, b, m, v = p
    s = g / jnp.sqrt(v + eps)
    return y * s + (b - m * s)

  out = jnp.maximum(bn(conv(x, w1_oihw), bn1), 0.0)
  out = jnp.maximum(bn(conv(out, w2_oihw), bn2) + x, 0.0)
  return jnp.transpose(out, (0, 3, 1, 2))


if __name__ == "__main__":
  # inplanes = planes = 8, spatial 16x16, stride=1, downsample=None.
  # W * C = 128 -> the flattened width*channel axis exactly fills the lanes.
  N, C, H, W = 2, 8, 16, 16
  key = jax.random.PRNGKey(0)
  keys = jax.random.split(key, 11)

  x = jax.random.normal(keys[0], (N, C, H, W), jnp.float32)

  # PyTorch conv3x3 weights: (out, in, 3, 3), bias=False.
  w1 = jax.random.normal(keys[1], (C, C, 3, 3), jnp.float32) * 0.1
  w2 = jax.random.normal(keys[2], (C, C, 3, 3), jnp.float32) * 0.1

  # BatchNorm (eval mode) parameters: gamma, beta, running_mean, running_var.
  g1 = 1.0 + 0.1 * jax.random.normal(keys[3], (C,), jnp.float32)
  b1 = 0.1 * jax.random.normal(keys[4], (C,), jnp.float32)
  m1 = 0.1 * jax.random.normal(keys[5], (C,), jnp.float32)
  v1 = jnp.abs(1.0 + 0.1 * jax.random.normal(keys[6], (C,), jnp.float32))
  g2 = 1.0 + 0.1 * jax.random.normal(keys[7], (C,), jnp.float32)
  b2 = 0.1 * jax.random.normal(keys[8], (C,), jnp.float32)
  m2 = 0.1 * jax.random.normal(keys[9], (C,), jnp.float32)
  v2 = jnp.abs(1.0 + 0.1 * jax.random.normal(keys[10], (C,), jnp.float32))
  bn1 = (g1, b1, m1, v1)
  bn2 = (g2, b2, m2, v2)

  params = prepare_basic_block_params(w1, bn1, w2, bn2, W)
  ref = jax.block_until_ready(_reference_forward(x, w1, bn1, w2, bn2))

  # f32 debug path: strict check against the lax.conv reference.
  fwd_f32 = jax.jit(functools.partial(basic_block_forward,
                                      compute_dtype=jnp.float32))
  out_f32 = jax.block_until_ready(fwd_f32(x, params))
  assert out_f32.shape == (N, C, H, W), out_f32.shape
  np.testing.assert_allclose(np.asarray(out_f32), np.asarray(ref),
                             rtol=1e-4, atol=1e-4)

  # Default path: bf16 MXU operands, f32 accumulation, exact-f32 residual.
  fwd = jax.jit(basic_block_forward)
  out = jax.block_until_ready(fwd(x, params))
  assert out.shape == (N, C, H, W), out.shape
  np.testing.assert_allclose(np.asarray(out), np.asarray(ref),
                             rtol=1e-1, atol=1e-1)

  print("KERNEL_OK")
</pallas_src>

<mosaic_0001>
module attributes {stable_mosaic.version = 11 : i64} {
  func.func @_fused_basicblock_kernel(%arg0: i32, %arg1: memref<1x16x128xf32, #tpu.memory_space<vmem>>, %arg2: memref<3x128x128xf32, #tpu.memory_space<vmem>>, %arg3: memref<1x128xf32, #tpu.memory_space<vmem>>, %arg4: memref<3x128x128xf32, #tpu.memory_space<vmem>>, %arg5: memref<1x128xf32, #tpu.memory_space<vmem>>, %arg6: memref<1x16x128xf32, #tpu.memory_space<vmem>>, %arg7: memref<1x18x128xf32, #tpu.memory_space<vmem>>, %arg8: memref<1x18x128xf32, #tpu.memory_space<vmem>>) attributes {dimension_semantics = [#tpu.dimension_semantics<parallel>], iteration_bounds = array<i64: 2>, scalar_prefetch = 0 : i64, scratch_operands = 2 : i64, tpu.core_type = #tpu.core_type<tc>, window_params = [{transform_indices = @transform_0, window_bounds = array<i64: 1, 16, 128>}, {pipeline_mode = #tpu.pipeline_mode<synchronous>, transform_indices = @transform_1, window_bounds = array<i64: 3, 128, 128>}, {pipeline_mode = #tpu.pipeline_mode<synchronous>, transform_indices = @transform_2, window_bounds = array<i64: 1, 128>}, {pipeline_mode = #tpu.pipeline_mode<synchronous>, transform_indices = @transform_3, window_bounds = array<i64: 3, 128, 128>}, {pipeline_mode = #tpu.pipeline_mode<synchronous>, transform_indices = @transform_4, window_bounds = array<i64: 1, 128>}, {transform_indices = @transform_5, window_bounds = array<i64: 1, 16, 128>}]} {
    %cst = arith.constant 0.000000e+00 : f32
    %0 = vector.broadcast %cst : f32 to vector<1x1x128xf32>
    %c0 = arith.constant 0 : index
    %c0_0 = arith.constant 0 : index
    %c0_1 = arith.constant 0 : index
    %1 = vector.load %arg7[%c0, %c0_0, %c0_1] : memref<1x18x128xf32, #tpu.memory_space<vmem>>, vector<1x1x128xf32>
    tpu.vector_store %arg7[%c0, %c0_0, %c0_1], %0 {strides = array<i32>} : memref<1x18x128xf32, #tpu.memory_space<vmem>>, vector<1x1x128xf32>,
    %c0_2 = arith.constant 0 : index
    %c17 = arith.constant 17 : index
    %c0_3 = arith.constant 0 : index
    %2 = vector.load %arg7[%c0_2, %c17, %c0_3] : memref<1x18x128xf32, #tpu.memory_space<vmem>>, vector<1x1x128xf32>
    tpu.vector_store %arg7[%c0_2, %c17, %c0_3], %0 {strides = array<i32>} : memref<1x18x128xf32, #tpu.memory_space<vmem>>, vector<1x1x128xf32>,
    %c0_4 = arith.constant 0 : index
    %c0_5 = arith.constant 0 : index
    %c0_6 = arith.constant 0 : index
    %3 = vector.load %arg8[%c0_4, %c0_5, %c0_6] : memref<1x18x128xf32, #tpu.memory_space<vmem>>, vector<1x1x128xf32>
    tpu.vector_store %arg8[%c0_4, %c0_5, %c0_6], %0 {strides = array<i32>} : memref<1x18x128xf32, #tpu.memory_space<vmem>>, vector<1x1x128xf32>,
    %c0_7 = arith.constant 0 : index
    %c17_8 = arith.constant 17 : index
    %c0_9 = arith.constant 0 : index
    %4 = vector.load %arg8[%c0_7, %c17_8, %c0_9] : memref<1x18x128xf32, #tpu.memory_space<vmem>>, vector<1x1x128xf32>
    tpu.vector_store %arg8[%c0_7, %c17_8, %c0_9], %0 {strides = array<i32>} : memref<1x18x128xf32, #tpu.memory_space<vmem>>, vector<1x1x128xf32>,
    %c0_10 = arith.constant 0 : index
    %c0_11 = arith.constant 0 : index
    %c0_12 = arith.constant 0 : index
    %5 = vector.load %arg1[%c0_10, %c0_11, %c0_12] : memref<1x16x128xf32, #tpu.memory_space<vmem>>, vector<1x16x128xf32>
    %c0_13 = arith.constant 0 : index
    %c1 = arith.constant 1 : index
    %c0_14 = arith.constant 0 : index
    %6 = vector.load %arg7[%c0_13, %c1, %c0_14] : memref<1x18x128xf32, #tpu.memory_space<vmem>>, vector<1x16x128xf32>
    tpu.vector_store %arg7[%c0_13, %c1, %c0_14], %5 {strides = array<i32>} : memref<1x18x128xf32, #tpu.memory_space<vmem>>, vector<1x16x128xf32>,
    %c0_15 = arith.constant 0 : index
    %c0_16 = arith.constant 0 : index
    %7 = vector.load %arg3[%c0_15, %c0_16] : memref<1x128xf32, #tpu.memory_space<vmem>>, vector<1x128xf32>
    %8 = vector.shape_cast %7 : vector<1x128xf32> to vector<1x128xf32>
    %9 = vector.broadcast %8 : vector<1x128xf32> to vector<16x128xf32>
    %c0_17 = arith.constant 0 : index
    %c0_18 = arith.constant 0 : index
    %c0_19 = arith.constant 0 : index
    %10 = vector.load %arg7[%c0_17, %c0_18, %c0_19] : memref<1x18x128xf32, #tpu.memory_space<vmem>>, vector<1x16x128xf32>
    %11 = vector.shape_cast %10 : vector<1x16x128xf32> to vector<16x128xf32>
    %c0_20 = arith.constant 0 : index
    %c0_21 = arith.constant 0 : index
    %c0_22 = arith.constant 0 : index
    %12 = vector.load %arg2[%c0_20, %c0_21, %c0_22] : memref<3x128x128xf32, #tpu.memory_space<vmem>>, vector<1x128x128xf32>
    %13 = vector.shape_cast %12 : vector<1x128x128xf32> to vector<128x128xf32>
    %cst_23 = arith.constant dense<0.000000e+00> : vector<16x128xf32>
    %14 = tpu.matmul %11, %13, %cst_23 {dimension_numbers = #tpu.dot_dimension_numbers<[1], [0], [0], [1], [0, 0, 1, 1], [], []>} : vector<16x128xf32>, vector<128x128xf32>, vector<16x128xf32> -> vector<16x128xf32>
    %15 = arith.addf %9, %14 : vector<16x128xf32>
    %c0_24 = arith.constant 0 : index
    %c1_25 = arith.constant 1 : index
    %c0_26 = arith.constant 0 : index
    %16 = vector.load %arg7[%c0_24, %c1_25, %c0_26] : memref<1x18x128xf32, #tpu.memory_space<vmem>>, vector<1x16x128xf32>
    %17 = vector.shape_cast %16 : vector<1x16x128xf32> to vector<16x128xf32>
    %c1_27 = arith.constant 1 : index
    %c0_28 = arith.constant 0 : index
    %c0_29 = arith.constant 0 : index
    %18 = vector.load %arg2[%c1_27, %c0_28, %c0_29] : memref<3x128x128xf32, #tpu.memory_space<vmem>>, vector<1x128x128xf32>
    %19 = vector.shape_cast %18 : vector<1x128x128xf32> to vector<128x128xf32>
    %cst_30 = arith.constant dense<0.000000e+00> : vector<16x128xf32>
    %20 = tpu.matmul %17, %19, %cst_30 {dimension_numbers = #tpu.dot_dimension_numbers<[1], [0], [0], [1], [0, 0, 1, 1], [], []>} : vector<16x128xf32>, vector<128x128xf32>, vector<16x128xf32> -> vector<16x128xf32>
    %21 = arith.addf %15, %20 : vector<16x128xf32>
    %c0_31 = arith.constant 0 : index
    %c2 = arith.constant 2 : index
    %c0_32 = arith.constant 0 : index
    %22 = vector.load %arg7[%c0_31, %c2, %c0_32] : memref<1x18x128xf32, #tpu.memory_space<vmem>>, vector<1x16x128xf32>
    %23 = vector.shape_cast %22 : vector<1x16x128xf32> to vector<16x128xf32>
    %c2_33 = arith.constant 2 : index
    %c0_34 = arith.constant 0 : index
    %c0_35 = arith.constant 0 : index
    %24 = vector.load %arg2[%c2_33, %c0_34, %c0_35] : memref<3x128x128xf32, #tpu.memory_space<vmem>>, vector<1x128x128xf32>
    %25 = vector.shape_cast %24 : vector<1x128x128xf32> to vector<128x128xf32>
    %cst_36 = arith.constant dense<0.000000e+00> : vector<16x128xf32>
    %26 = tpu.matmul %23, %25, %cst_36 {dimension_numbers = #tpu.dot_dimension_numbers<[1], [0], [0], [1], [0, 0, 1, 1], [], []>} : vector<16x128xf32>, vector<128x128xf32>, vector<16x128xf32> -> vector<16x128xf32>
    %27 = arith.addf %21, %26 : vector<16x128xf32>
    %cst_37 = arith.constant 0.000000e+00 : f32
    %28 = vector.broadcast %cst_37 : f32 to vector<16x128xf32>
    %29 = arith.maximumf %27, %28 : vector<16x128xf32>
    %30 = vector.shape_cast %29 : vector<16x128xf32> to vector<1x16x128xf32>
    %c0_38 = arith.constant 0 : index
    %c1_39 = arith.constant 1 : index
    %c0_40 = arith.constant 0 : index
    %31 = vector.load %arg8[%c0_38, %c1_39, %c0_40] : memref<1x18x128xf32, #tpu.memory_space<vmem>>, vector<1x16x128xf32>
    tpu.vector_store %arg8[%c0_38, %c1_39, %c0_40], %30 {strides = array<i32>} : memref<1x18x128xf32, #tpu.memory_space<vmem>>, vector<1x16x128xf32>,
    %c0_41 = arith.constant 0 : index
    %c0_42 = arith.constant 0 : index
    %32 = vector.load %arg5[%c0_41, %c0_42] : memref<1x128xf32, #tpu.memory_space<vmem>>, vector<1x128xf32>
    %33 = vector.shape_cast %32 : vector<1x128xf32> to vector<1x128xf32>
    %34 = vector.broadcast %33 : vector<1x128xf32> to vector<16x128xf32>
    %c0_43 = arith.constant 0 : index
    %c0_44 = arith.constant 0 : index
    %c0_45 = arith.constant 0 : index
    %35 = vector.load %arg8[%c0_43, %c0_44, %c0_45] : memref<1x18x128xf32, #tpu.memory_space<vmem>>, vector<1x16x128xf32>
    %36 = vector.shape_cast %35 : vector<1x16x128xf32> to vector<16x128xf32>
    %c0_46 = arith.constant 0 : index
    %c0_47 = arith.constant 0 : index
    %c0_48 = arith.constant 0 : index
    %37 = vector.load %arg4[%c0_46, %c0_47, %c0_48] : memref<3x128x128xf32, #tpu.memory_space<vmem>>, vector<1x128x128xf32>
    %38 = vector.shape_cast %37 : vector<1x128x128xf32> to vector<128x128xf32>
    %cst_49 = arith.constant dense<0.000000e+00> : vector<16x128xf32>
    %39 = tpu.matmul %36, %38, %cst_49 {dimension_numbers = #tpu.dot_dimension_numbers<[1], [0], [0], [1], [0, 0, 1, 1], [], []>} : vector<16x128xf32>, vector<128x128xf32>, vector<16x128xf32> -> vector<16x128xf32>
    %40 = arith.addf %34, %39 : vector<16x128xf32>
    %c0_50 = arith.constant 0 : index
    %c1_51 = arith.constant 1 : index
    %c0_52 = arith.constant 0 : index
    %41 = vector.load %arg8[%c0_50, %c1_51, %c0_52] : memref<1x18x128xf32, #tpu.memory_space<vmem>>, vector<1x16x128xf32>
    %42 = vector.shape_cast %41 : vector<1x16x128xf32> to vector<16x128xf32>
    %c1_53 = arith.constant 1 : index
    %c0_54 = arith.constant 0 : index
    %c0_55 = arith.constant 0 : index
    %43 = vector.load %arg4[%c1_53, %c0_54, %c0_55] : memref<3x128x128xf32, #tpu.memory_space<vmem>>, vector<1x128x128xf32>
    %44 = vector.shape_cast %43 : vector<1x128x128xf32> to vector<128x128xf32>
    %cst_56 = arith.constant dense<0.000000e+00> : vector<16x128xf32>
    %45 = tpu.matmul %42, %44, %cst_56 {dimension_numbers = #tpu.dot_dimension_numbers<[1], [0], [0], [1], [0, 0, 1, 1], [], []>} : vector<16x128xf32>, vector<128x128xf32>, vector<16x128xf32> -> vector<16x128xf32>
    %46 = arith.addf %40, %45 : vector<16x128xf32>
    %c0_57 = arith.constant 0 : index
    %c2_58 = arith.constant 2 : index
    %c0_59 = arith.constant 0 : index
    %47 = vector.load %arg8[%c0_57, %c2_58, %c0_59] : memref<1x18x128xf32, #tpu.memory_space<vmem>>, vector<1x16x128xf32>
    %48 = vector.shape_cast %47 : vector<1x16x128xf32> to vector<16x128xf32>
    %c2_60 = arith.constant 2 : index
    %c0_61 = arith.constant 0 : index
    %c0_62 = arith.constant 0 : index
    %49 = vector.load %arg4[%c2_60, %c0_61, %c0_62] : memref<3x128x128xf32, #tpu.memory_space<vmem>>, vector<1x128x128xf32>
    %50 = vector.shape_cast %49 : vector<1x128x128xf32> to vector<128x128xf32>
    %cst_63 = arith.constant dense<0.000000e+00> : vector<16x128xf32>
    %51 = tpu.matmul %48, %50, %cst_63 {dimension_numbers = #tpu.dot_dimension_numbers<[1], [0], [0], [1], [0, 0, 1, 1], [], []>} : vector<16x128xf32>, vector<128x128xf32>, vector<16x128xf32> -> vector<16x128xf32>
    %52 = arith.addf %46, %51 : vector<16x128xf32>
    %53 = vector.shape_cast %5 : vector<1x16x128xf32> to vector<16x128xf32>
    %54 = arith.addf %52, %53 : vector<16x128xf32>
    %cst_64 = arith.constant 0.000000e+00 : f32
    %55 = vector.broadcast %cst_64 : f32 to vector<16x128xf32>
    %56 = arith.maximumf %54, %55 : vector<16x128xf32>
    %57 = vector.shape_cast %56 : vector<16x128xf32> to vector<1x16x128xf32>
    %c0_65 = arith.constant 0 : index
    %c0_66 = arith.constant 0 : index
    %c0_67 = arith.constant 0 : index
    %58 = vector.load %arg6[%c0_65, %c0_66, %c0_67] : memref<1x16x128xf32, #tpu.memory_space<vmem>>, vector<1x16x128xf32>
    tpu.vector_store %arg6[%c0_65, %c0_66, %c0_67], %57 {strides = array<i32>} : memref<1x16x128xf32, #tpu.memory_space<vmem>>, vector<1x16x128xf32>,
    return
  }
  func.func @transform_0(%arg0: i32) -> (i32, i32, i32) {
    %c0_i32 = arith.constant 0 : i32
    %c0_i32_0 = arith.constant 0 : i32
    %c0_i32_1 = arith.constant 0 : i32
    return %arg0, %c0_i32, %c0_i32_0 : i32, i32, i32
  }
  func.func @transform_1(%arg0: i32) -> (i32, i32, i32) {
    %c0_i32 = arith.constant 0 : i32
    %c0_i32_0 = arith.constant 0 : i32
    %c0_i32_1 = arith.constant 0 : i32
    %c0_i32_2 = arith.constant 0 : i32
    return %c0_i32, %c0_i32_0, %c0_i32_1 : i32, i32, i32
  }
  func.func @transform_2(%arg0: i32) -> (i32, i32) {
    %c0_i32 = arith.constant 0 : i32
    %c0_i32_0 = arith.constant 0 : i32
    %c0_i32_1 = arith.constant 0 : i32
    return %c0_i32, %c0_i32_0 : i32, i32
  }
  func.func @transform_3(%arg0: i32) -> (i32, i32, i32) {
    %c0_i32 = arith.constant 0 : i32
    %c0_i32_0 = arith.constant 0 : i32
    %c0_i32_1 = arith.constant 0 : i32
    %c0_i32_2 = arith.constant 0 : i32
    return %c0_i32, %c0_i32_0, %c0_i32_1 : i32, i32, i32
  }
  func.func @transform_4(%arg0: i32) -> (i32, i32) {
    %c0_i32 = arith.constant 0 : i32
    %c0_i32_0 = arith.constant 0 : i32
    %c0_i32_1 = arith.constant 0 : i32
    return %c0_i32, %c0_i32_0 : i32, i32
  }
  func.func @transform_5(%arg0: i32) -> (i32, i32, i32) {
    %c0_i32 = arith.constant 0 : i32
    %c0_i32_0 = arith.constant 0 : i32
    %c0_i32_1 = arith.constant 0 : i32
    return %arg0, %c0_i32, %c0_i32_0 : i32, i32, i32
  }
}

</mosaic_0001>

<llo_original>
// kernel: basic_block_forward.1
$region0: #{basic_block_forward.1}
  #allocation0 [shape = 'u32[]', space=smem, size = 0x4, offset = 0x4, fixed_abs, tag = 'smem constant byte address 0x4 - core index']
  #allocation1 [shape = 'u32[144,128]{1,0:T(1,128)}', space=vmem, size = 0x12000, scoped, tag = 'internal scratch']
  #allocation2 [shape = 'f32[1,18,128]{2,1,0:T(8,128)}', space=vmem, size = 0x3000, scoped, tag = 'scratch operand']
  #allocation3 [shape = 'f32[1,18,128]{2,1,0:T(8,128)}', space=vmem, size = 0x3000, scoped, tag = 'scratch operand']
  %s0 = inlined_call_operand.vmem [shape: f32[2,16,128], index: 0, kind: input, shape index: {}]
  %s1 = inlined_call_operand.vmem [shape: f32[3,128,128], index: 1, kind: input, shape index: {}]
  %s2 = inlined_call_operand.vmem [shape: f32[1,128], index: 2, kind: input, shape index: {}]
  %s3 = inlined_call_operand.vmem [shape: f32[3,128,128], index: 3, kind: input, shape index: {}]
  %s4 = inlined_call_operand.vmem [shape: f32[1,128], index: 4, kind: input, shape index: {}]
  %s5 = inlined_call_operand.vmem [shape: f32[2,16,128], index: 5, kind: output, shape index: {}]
  %s6 = sld [smem:[#allocation0]]
  $region53: #{basic_block_forward.1} parent=0
    _
  %s8 = ssub.s32 1, %s6
  %s9 = scalar_select 0, %s8, %s6
  loop: start=0, step=1, limit=4
  $region2: #{basic_block_forward.1} parent=0 // loop_pre_header
    _
  $region3: #{basic_block_forward.1} parent=0 // loop_header
    %s11 = sphi 0, %s15
    %p12 = scmp.ge.s32.totalorder %s11, 4
    %s21 = sphi 0, %s23
    %s24 = sphi 0, %s21
    %s25 = sphi 0, %s24
    %s41 = sphi 0, %s25
    %s45 = sphi 0, %s45
    %s47 = sphi 0, %s45
    %s48 = sphi 0, %s47
    %s62 = sphi 0, %s48
    %s66 = sphi 0, %s66
    %s68 = sphi 0, %s66
    %s69 = sphi 0, %s68
    %s83 = sphi 0, %s69
    %s87 = sphi 0, %s87
    %s89 = sphi 0, %s87
    %s90 = sphi 0, %s89
    %s104 = sphi 0, %s90
    %s108 = sphi 0, %s108
    %s110 = sphi 0, %s108
    %s111 = sphi 0, %s110
    %s125 = sphi 0, %s111
    %s131 = sphi 0, %s133
    %s134 = sphi 0, %s131
    %s135 = sphi 0, %s134
    %s151 = sphi 0, %s135
  $region4: #{basic_block_forward.1} parent=0 // loop_header_branch
    %14 = sbr.rel (%p12) target = $region8
  $region5: #{basic_block_forward.1} parent=0 // loop_body
    %s16 = ssub.s32 %s11, 1
    %s17 = ssub.s32 %s11, 2
    %s18 = sadd.s32 %s11, 1
    %s19 = ssub.s32 %s11, %s18
    %p20 = scmp.eq.s32.totalorder %s19, 0
    %s22 = sadd.s32 %s21, 1
    %s23 = scalar_select %p20, %s21, %s22
    %p26 = pneg %p20
    %p27 = scmp.eq.s32.totalorder %s11, 1
    %p28 = por %p26, %p27
    %p29 = scmp.ne.s32.totalorder %s21, %s24
    %p30 = scmp.eq.s32.totalorder %s11, 0
    %p31 = por %p29, %p30
    %p32 = scmp.ne.s32.totalorder %s21, %s24
    %p33 = scmp.eq.s32.totalorder %s16, 1
    %p34 = por %p32, %p33
    %p35 = scmp.ne.s32.totalorder %s24, %s25
    %p36 = scmp.eq.s32.totalorder %s16, 0
    %p37 = por %p35, %p36
    %p38 = scmp.ne.s32.totalorder %s24, %s25
    %p39 = scmp.eq.s32.totalorder %s17, 1
    %p40 = por %p38, %p39
    %p42 = scmp.ne.s32.totalorder %s25, %s41
    %p43 = scmp.eq.s32.totalorder %s17, 0
    %p44 = por %p42, %p43
    %s46 = sadd.s32 %s45, 1
    %p49 = scmp.eq.s32.totalorder %s11, 1
    %p50 = scmp.ne.s32.totalorder %s45, %s47
    %p51 = scmp.eq.s32.totalorder %s11, 0
    %p52 = por %p50, %p51
    %p53 = scmp.ne.s32.totalorder %s45, %s47
    %p54 = scmp.eq.s32.totalorder %s16, 1
    %p55 = por %p53, %p54
    %p56 = scmp.ne.s32.totalorder %s47, %s48
    %p57 = scmp.eq.s32.totalorder %s16, 0
    %p58 = por %p56, %p57
    %p59 = scmp.ne.s32.totalorder %s47, %s48
    %p60 = scmp.eq.s32.totalorder %s17, 1
    %p61 = por %p59, %p60
    %p63 = scmp.ne.s32.totalorder %s48, %s62
    %p64 = scmp.eq.s32.totalorder %s17, 0
    %p65 = por %p63, %p64
    %s67 = sadd.s32 %s66, 1
    %p70 = scmp.eq.s32.totalorder %s11, 1
    %p71 = scmp.ne.s32.totalorder %s66, %s68
    %p72 = scmp.eq.s32.totalorder %s11, 0
    %p73 = por %p71, %p72
    %p74 = scmp.ne.s32.totalorder %s66, %s68
    %p75 = scmp.eq.s32.totalorder %s16, 1
    %p76 = por %p74, %p75
    %p77 = scmp.ne.s32.totalorder %s68, %s69
    %p78 = scmp.eq.s32.totalorder %s16, 0
    %p79 = por %p77, %p78
    %p80 = scmp.ne.s32.totalorder %s68, %s69
    %p81 = scmp.eq.s32.totalorder %s17, 1
    %p82 = por %p80, %p81
    %p84 = scmp.ne.s32.totalorder %s69, %s83
    %p85 = scmp.eq.s32.totalorder %s17, 0
    %p86 = por %p84, %p85
    %s88 = sadd.s32 %s87, 1
    %p91 = scmp.eq.s32.totalorder %s11, 1
    %p92 = scmp.ne.s32.totalorder %s87, %s89
    %p93 = scmp.eq.s32.totalorder %s11, 0
    %p94 = por %p92, %p93
    %p95 = scmp.ne.s32.totalorder %s87, %s89
    %p96 = scmp.eq.s32.totalorder %s16, 1
    %p97 = por %p95, %p96
    %p98 = scmp.ne.s32.totalorder %s89, %s90
    %p99 = scmp.eq.s32.totalorder %s16, 0
    %p100 = por %p98, %p99
    %p101 = scmp.ne.s32.totalorder %s89, %s90
    %p102 = scmp.eq.s32.totalorder %s17, 1
    %p103 = por %p101, %p102
    %p105 = scmp.ne.s32.totalorder %s90, %s104
    %p106 = scmp.eq.s32.totalorder %s17, 0
    %p107 = por %p105, %p106
    %s109 = sadd.s32 %s108, 1
    %p112 = scmp.eq.s32.totalorder %s11, 1
    %p113 = scmp.ne.s32.totalorder %s108, %s110
    %p114 = scmp.eq.s32.totalorder %s11, 0
    %p115 = por %p113, %p114
    %p116 = scmp.ne.s32.totalorder %s108, %s110
    %p117 = scmp.eq.s32.totalorder %s16, 1
    %p118 = por %p116, %p117
    %p119 = scmp.ne.s32.totalorder %s110, %s111
    %p120 = scmp.eq.s32.totalorder %s16, 0
    %p121 = por %p119, %p120
    %p122 = scmp.ne.s32.totalorder %s110, %s111
    %p123 = scmp.eq.s32.totalorder %s17, 1
    %p124 = por %p122, %p123
    %p126 = scmp.ne.s32.totalorder %s111, %s125
    %p127 = scmp.eq.s32.totalorder %s17, 0
    %p128 = por %p126, %p127
    %s129 = ssub.s32 %s11, %s18
    %p130 = scmp.eq.s32.totalorder %s129, 0
    %s132 = sadd.s32 %s131, 1
    %s133 = scalar_select %p130, %s131, %s132
    %p136 = pneg %p130
    %p137 = scmp.eq.s32.totalorder %s11, 1
    %p138 = por %p136, %p137
    %p139 = scmp.ne.s32.totalorder %s131, %s134
    %p140 = scmp.eq.s32.totalorder %s11, 0
    %p141 = por %p139, %p140
    %p142 = scmp.ne.s32.totalorder %s131, %s134
    %p143 = scmp.eq.s32.totalorder %s16, 1
    %p144 = por %p142, %p143
    %p145 = scmp.ne.s32.totalorder %s134, %s135
    %p146 = scmp.eq.s32.totalorder %s16, 0
    %p147 = por %p145, %p146
    %p148 = scmp.ne.s32.totalorder %s134, %s135
    %p149 = scmp.eq.s32.totalorder %s17, 1
    %p150 = por %p148, %p149
    %p152 = scmp.ne.s32.totalorder %s135, %s151
    %p153 = scmp.eq.s32.totalorder %s17, 0
    %p154 = por %p152, %p153
    %p155 = scmp.le.s32.totalorder 1, %s11
    %p156 = scmp.lt.s32.totalorder %s11, 3
    %p157 = pnand %p155, %p156
    %p158 = pneg %p157
    // Predicated region
    $region9: #{basic_block_forward.1} parent=5 // pred_check
      _
    $region10: #{basic_block_forward.1} parent=5 // pred_check_branch
      %160 = sbr.rel (%p157) target = $region12
    $region11: #{basic_block_forward.1} parent=5 // pred_region
      %s161 = ssub.s32 %s11, 1
      // Predicated region
      $region13: #{basic_block_forward.1} parent=11 // pred_check
        %p162 = pneg %p58
      $region14: #{basic_block_forward.1} parent=11 // pred_check_branch
        %164 = sbr.rel (%p162) target = $region16
      $region15: #{basic_block_forward.1} parent=11 // pred_region
        _
      $region16: #{basic_block_forward.1} parent=11 // pred_fallthru
        _
      // Predicated region
      $region17: #{basic_block_forward.1} parent=11 // pred_check
        %p165 = pneg %p79
      $region18: #{basic_block_forward.1} parent=11 // pred_check_branch
        %167 = sbr.rel (%p165) target = $region20
      $region19: #{basic_block_forward.1} parent=11 // pred_region
        _
      $region20: #{basic_block_forward.1} parent=11 // pred_fallthru
        _
      // Predicated region
      $region21: #{basic_block_forward.1} parent=11 // pred_check
        %p168 = pneg %p100
      $region22: #{basic_block_forward.1} parent=11 // pred_check_branch
        %170 = sbr.rel (%p168) target = $region24
      $region23: #{basic_block_forward.1} parent=11 // pred_region
        _
      $region24: #{basic_block_forward.1} parent=11 // pred_fallthru
        _
      // Predicated region
      $region25: #{basic_block_forward.1} parent=11 // pred_check
        %p171 = pneg %p121
      $region26: #{basic_block_forward.1} parent=11 // pred_check_branch
        %173 = sbr.rel (%p171) target = $region28
      $region27: #{basic_block_forward.1} parent=11 // pred_region
        _
      $region28: #{basic_block_forward.1} parent=11 // pred_fallthru
        _
    $region12: #{basic_block_forward.1} parent=5 // pred_fallthru
      _
    %p174 = scmp.lt.s32.totalorder %s11, 2
    // Predicated region
    $region29: #{basic_block_forward.1} parent=5 // pred_check
      %p175 = pneg %p174
    $region30: #{basic_block_forward.1} parent=5 // pred_check_branch
      %177 = sbr.rel (%p175) target = $region32
    $region31: #{basic_block_forward.1} parent=5 // pred_region
      // Predicated region
      $region33: #{basic_block_forward.1} parent=31 // pred_check
        %p178 = pneg %p31
      $region34: #{basic_block_forward.1} parent=31 // pred_check_branch
        %180 = sbr.rel (%p178) target = $region36
      $region35: #{basic_block_forward.1} parent=31 // pred_region
        %p181 = scmp.lt.s32.totalorder %s11, 1
        %s182 = scalar_select %p181, %s11, 1
        %s183 = smul.addr %s182, 2
        %s184 = smul.addr %s183, 8
        %s185 = scalar_lea.vmem %s0, %s184
      $region36: #{basic_block_forward.1} parent=31 // pred_fallthru
        _
    $region32: #{basic_block_forward.1} parent=5 // pred_fallthru
      _
    %p186 = scmp.le.s32.totalorder 1, %s11
    %p187 = scmp.lt.s32.totalorder %s11, 3
    %p188 = pnand %p186, %p187
    %p189 = pneg %p188
    // Predicated region
    $region37: #{basic_block_forward.1} parent=5 // pred_check
      _
    $region38: #{basic_block_forward.1} parent=5 // pred_check_branch
      %191 = sbr.rel (%p188) target = $region40
    $region39: #{basic_block_forward.1} parent=5 // pred_region
      %s192 = ssub.s32 %s11, 1
      %p193 = scmp.lt.s32.totalorder %s16, 1
      %s194 = scalar_select %p193, %s16, 1
      %s195 = smul.addr %s194, 2
      %s196 = smul.addr %s195, 8
      %s197 = scalar_lea.vmem %s0, %s196
      %p198 = pneg %p37
      %p199 = pneg %p34
      %p200 = pneg %p58
      %p201 = pneg %p55
      %p202 = pneg %p79
      %p203 = pneg %p76
      %p204 = pneg %p100
      %p205 = pneg %p97
      %p206 = pneg %p121
      %p207 = pneg %p118
      %p208 = pneg %p147
      %p209 = pneg %p144
      %p210 = scmp.lt.s32.totalorder %s16, 1
      %s211 = scalar_select %p210, %s16, 1
      %s212 = smul.addr %s211, 2
      %s213 = smul.addr %s212, 8
      %s214 = scalar_lea.vmem %s5, %s213
      %p215 = scmp.lt.s32.totalorder %s16, 1
      %s216 = scalar_select %p215, %s16, 1
      %s217 = smul.addr %s216, 2
      %s218 = smul.addr %s217, 8
      %s219 = scalar_lea.vmem %s0, %s218
      %p220 = scmp.lt.s32.totalorder %s16, 1
      %s221 = scalar_select %p220, %s16, 1
      %s222 = smul.addr %s221, 2
      %s223 = smul.addr %s222, 8
      %s224 = scalar_lea.vmem %s5, %s223
      %225 = vst [vmem:[#allocation2] sm:$0x1] 0.0
      %226 = vst [vmem:[#allocation2 + $0x11] sm:$0x1] 0.0
      %227 = vst [vmem:[#allocation3] sm:$0x1] 0.0
      %228 = vst [vmem:[#allocation3 + $0x11] sm:$0x1] 0.0
      %v229 = vld [vmem:[%s219] sm:$0xff]
      %v230 = vld [vmem:[%s219 + $0x8] sm:$0xff]
      %231 = vst [vmem:[#allocation2 + $0x1] sm:$0xff] %v229
      %232 = vst [vmem:[#allocation2 + $0x9] sm:$0xff] %v230
      %v233 = vld [vmem:[%s2] sm:$0x1]
      %v235 = vlaneseq
      %v236 = vshrl.u32 %v235, 7
      %v237 = vsub.s32 0, %v236
      %v238 = vrot.slane %v233, %v237
      %v240 = vld [vmem:[#allocation2] sm:$0xff]
      %v241 = vld [vmem:[#allocation2 + $0x8] sm:$0xff]
      %v242 = vld [vmem:[%s1] sm:$0xff]
      %v243 = vld [vmem:[%s1 + $0x8] sm:$0xff]
      %v244 = vld [vmem:[%s1 + $0x10] sm:$0xff]
      %v245 = vld [vmem:[%s1 + $0x18] sm:$0xff]
      %v246 = vld [vmem:[%s1 + $0x20] sm:$0xff]
      %v247 = vld [vmem:[%s1 + $0x28] sm:$0xff]
      %v248 = vld [vmem:[%s1 + $0x30] sm:$0xff]
      %v249 = vld [vmem:[%s1 + $0x38] sm:$0xff]
      %v250 = vld [vmem:[%s1 + $0x40] sm:$0xff]
      %v251 = vld [vmem:[%s1 + $0x48] sm:$0xff]
      %v252 = vld [vmem:[%s1 + $0x50] sm:$0xff]
      %v253 = vld [vmem:[%s1 + $0x58] sm:$0xff]
      %v254 = vld [vmem:[%s1 + $0x60] sm:$0xff]
      %v255 = vld [vmem:[%s1 + $0x68] sm:$0xff]
      %v256 = vld [vmem:[%s1 + $0x70] sm:$0xff]
      %v257 = vld [vmem:[%s1 + $0x78] sm:$0xff]
      %258 = vmatprep.subr.mxu0 0.0
      %259 = vmatpush1.msra.mxu0 %v242
      %260 = vmatprep.subr.mxu0 0.0
      %261 = vmatpush1.msra.mxu0 %v243
      %262 = vmatprep.subr.mxu0 0.0
      %263 = vmatpush1.msra.mxu0 %v244
      %264 = vmatprep.subr.mxu0 0.0
      %265 = vmatpush1.msra.mxu0 %v245
      %266 = vmatprep.subr.mxu0 0.0
      %267 = vmatpush1.msra.mxu0 %v246
      %268 = vmatprep.subr.mxu0 0.0
      %269 = vmatpush1.msra.mxu0 %v247
      %270 = vmatprep.subr.mxu0 0.0
      %271 = vmatpush1.msra.mxu0 %v248
      %272 = vmatprep.subr.mxu0 0.0
      %273 = vmatpush1.msra.mxu0 %v249
      %274 = vmatprep.subr.mxu0 0.0
      %275 = vmatpush1.msra.mxu0 %v250
      %276 = vmatprep.subr.mxu0 0.0
      %277 = vmatpush1.msra.mxu0 %v251
      %278 = vmatprep.subr.mxu0 0.0
      %279 = vmatpush1.msra.mxu0 %v252
      %280 = vmatprep.subr.mxu0 0.0
      %281 = vmatpush1.msra.mxu0 %v253
      %282 = vmatprep.subr.mxu0 0.0
      %283 = vmatpush1.msra.mxu0 %v254
      %284 = vmatprep.subr.mxu0 0.0
      %285 = vmatpush1.msra.mxu0 %v255
      %286 = vmatprep.subr.mxu0 0.0
      %287 = vmatpush1.msra.mxu0 %v256
      %288 = vmatprep.subr.mxu0 0.0
      %289 = vmatpush1.msra.mxu0 %v257
      %290 = vmatprep.subr.mxu0 0.0
      %291 = vmatpush1.msra.mxu0 0.0
      %292 = vmatprep.subr.mxu0 0.0
      %293 = vmatpush1.msra.mxu0 0.0
      %294 = vmatprep.subr.mxu0 0.0
      %295 = vmatpush1.msra.mxu0 0.0
      %296 = vmatprep.subr.mxu0 0.0
      %297 = vmatpush1.msra.mxu0 0.0
      %298 = vmatprep.subr.mxu0 0.0
      %299 = vmatpush1.msra.mxu0 0.0
      %300 = vmatprep.subr.mxu0 0.0
      %301 = vmatpush1.msra.mxu0 0.0
      %302 = vmatprep.subr.mxu0 0.0
      %303 = vmatpush1.msra.mxu0 0.0
      %304 = vmatprep.subr.mxu0 0.0
      %305 = vmatpush1.msra.mxu0 0.0
      %306 = vmatprep.subr.mxu0 0.0
      %307 = vmatpush1.msra.mxu0 0.0
      %308 = vmatprep.subr.mxu0 0.0
      %309 = vmatpush1.msra.mxu0 0.0
      %310 = vmatprep.subr.mxu0 0.0
      %311 = vmatpush1.msra.mxu0 0.0
      %312 = vmatprep.subr.mxu0 0.0
      %313 = vmatpush1.msra.mxu0 0.0
      %314 = vmatprep.subr.mxu0 0.0
      %315 = vmatpush1.msra.mxu0 0.0
      %316 = vmatprep.subr.mxu0 0.0
      %317 = vmatpush1.msra.mxu0 0.0
      %318 = vmatprep.subr.mxu0 0.0
      %319 = vmatpush1.msra.mxu0 0.0
      %320 = vmatprep.subr.mxu0 0.0
      %321 = vmatpush1.msra.mxu0 0.0
      %322 = vmatprep.mubr.f32.mxu0 0.0
      %323 = vmatmul.mubr.f32.gmra.mrb[0].mxu0 %v240
      %v324 = vpop.f32.mrb[0].mxu0
      %v325 = vadd.f32 0.0, %v324
      %v326 = vpop.f32.mrb[0].mxu0
      %327 = vmatprep.mubr.f32.mxu0 0.0
      %328 = vmatmul.mubr.f32.gmra.mrb[0].mxu0 %v241
      %v329 = vpop.f32.mrb[0].mxu0
      %v330 = vadd.f32 0.0, %v329
      %v331 = vpop.f32.mrb[0].mxu0
      %332 = vdwg.mxu0
      %v333 = vadd.f32 %v238, %v325
      %v334 = vadd.f32 %v238, %v330
      %v335 = vld [vmem:[#allocation2 + $0x1] sm:$0xff]
      %v336 = vld [vmem:[#allocation2 + $0x9] sm:$0xff]
      %s337 = scalar_lea.vmem %s1, 128
      %v338 = vld [vmem:[%s337] sm:$0xff]
      %v339 = vld [vmem:[%s337 + $0x8] sm:$0xff]
      %v340 = vld [vmem:[%s337 + $0x10] sm:$0xff]
      %v341 = vld [vmem:[%s337 + $0x18] sm:$0xff]
      %v342 = vld [vmem:[%s337 + $0x20] sm:$0xff]
      %v343 = vld [vmem:[%s337 + $0x28] sm:$0xff]
      %v344 = vld [vmem:[%s337 + $0x30] sm:$0xff]
      %v345 = vld [vmem:[%s337 + $0x38] sm:$0xff]
      %v346 = vld [vmem:[%s337 + $0x40] sm:$0xff]
      %v347 = vld [vmem:[%s337 + $0x48] sm:$0xff]
      %v348 = vld [vmem:[%s337 + $0x50] sm:$0xff]
      %v349 = vld [vmem:[%s337 + $0x58] sm:$0xff]
      %v350 = vld [vmem:[%s337 + $0x60] sm:$0xff]
      %v351 = vld [vmem:[%s337 + $0x68] sm:$0xff]
      %v352 = vld [vmem:[%s337 + $0x70] sm:$0xff]
      %v353 = vld [vmem:[%s337 + $0x78] sm:$0xff]
      %354 = vmatprep.subr.mxu0 0.0
      %355 = vmatpush1.msra.mxu0 %v338
      %356 = vmatprep.subr.mxu0 0.0
      %357 = vmatpush1.msra.mxu0 %v339
      %358 = vmatprep.subr.mxu0 0.0
      %359 = vmatpush1.msra.mxu0 %v340
      %360 = vmatprep.subr.mxu0 0.0
      %361 = vmatpush1.msra.mxu0 %v341
      %362 = vmatprep.subr.mxu0 0.0
      %363 = vmatpush1.msra.mxu0 %v342
      %364 = vmatprep.subr.mxu0 0.0
      %365 = vmatpush1.msra.mxu0 %v343
      %366 = vmatprep.subr.mxu0 0.0
      %367 = vmatpush1.msra.mxu0 %v344
      %368 = vmatprep.subr.mxu0 0.0
      %369 = vmatpush1.msra.mxu0 %v345
      %370 = vmatprep.subr.mxu0 0.0
      %371 = vmatpush1.msra.mxu0 %v346
      %372 = vmatprep.subr.mxu0 0.0
      %373 = vmatpush1.msra.mxu0 %v347
      %374 = vmatprep.subr.mxu0 0.0
      %375 = vmatpush1.msra.mxu0 %v348
      %376 = vmatprep.subr.mxu0 0.0
      %377 = vmatpush1.msra.mxu0 %v349
      %378 = vmatprep.subr.mxu0 0.0
      %379 = vmatpush1.msra.mxu0 %v350
      %380 = vmatprep.subr.mxu0 0.0
      %381 = vmatpush1.msra.mxu0 %v351
      %382 = vmatprep.subr.mxu0 0.0
      %383 = vmatpush1.msra.mxu0 %v352
      %384 = vmatprep.subr.mxu0 0.0
      %385 = vmatpush1.msra.mxu0 %v353
      %386 = vmatprep.subr.mxu0 0.0
      %387 = vmatpush1.msra.mxu0 0.0
      %388 = vmatprep.subr.mxu0 0.0
      %389 = vmatpush1.msra.mxu0 0.0
      %390 = vmatprep.subr.mxu0 0.0
      %391 = vmatpush1.msra.mxu0 0.0
      %392 = vmatprep.subr.mxu0 0.0
      %393 = vmatpush1.msra.mxu0 0.0
      %394 = vmatprep.subr.mxu0 0.0
      %395 = vmatpush1.msra.mxu0 0.0
      %396 = vmatprep.subr.mxu0 0.0
      %397 = vmatpush1.msra.mxu0 0.0
      %398 = vmatprep.subr.mxu0 0.0
      %399 = vmatpush1.msra.mxu0 0.0
      %400 = vmatprep.subr.mxu0 0.0
      %401 = vmatpush1.msra.mxu0 0.0
      %402 = vmatprep.subr.mxu0 0.0
      %403 = vmatpush1.msra.mxu0 0.0
      %404 = vmatprep.subr.mxu0 0.0
      %405 = vmatpush1.msra.mxu0 0.0
      %406 = vmatprep.subr.mxu0 0.0
      %407 = vmatpush1.msra.mxu0 0.0
      %408 = vmatprep.subr.mxu0 0.0
      %409 = vmatpush1.msra.mxu0 0.0
      %410 = vmatprep.subr.mxu0 0.0
      %411 = vmatpush1.msra.mxu0 0.0
      %412 = vmatprep.subr.mxu0 0.0
      %413 = vmatpush1.msra.mxu0 0.0
      %414 = vmatprep.subr.mxu0 0.0
      %415 = vmatpush1.msra.mxu0 0.0
      %416 = vmatprep.subr.mxu0 0.0
      %417 = vmatpush1.msra.mxu0 0.0
      %418 = vmatprep.mubr.f32.mxu0 0.0
      %419 = vmatmul.mubr.f32.gmra.mrb[0].mxu0 %v335
      %v420 = vpop.f32.mrb[0].mxu0
      %v421 = vadd.f32 0.0, %v420
      %v422 = vpop.f32.mrb[0].mxu0
      %423 = vmatprep.mubr.f32.mxu0 0.0
      %424 = vmatmul.mubr.f32.gmra.mrb[0].mxu0 %v336
      %v425 = vpop.f32.mrb[0].mxu0
      %v426 = vadd.f32 0.0, %v425
      %v427 = vpop.f32.mrb[0].mxu0
      %428 = vdwg.mxu0
      %v429 = vadd.f32 %v333, %v421
      %v430 = vadd.f32 %v334, %v426
      %v431 = vld [vmem:[#allocation2 + $0x2] sm:$0xff]
      %v432 = vld [vmem:[#allocation2 + $0xa] sm:$0xff]
      %s433 = scalar_lea.vmem %s1, 256
      %v434 = vld [vmem:[%s433] sm:$0xff]
      %v435 = vld [vmem:[%s433 + $0x8] sm:$0xff]
      %v436 = vld [vmem:[%s433 + $0x10] sm:$0xff]
      %v437 = vld [vmem:[%s433 + $0x18] sm:$0xff]
      %v438 = vld [vmem:[%s433 + $0x20] sm:$0xff]
      %v439 = vld [vmem:[%s433 + $0x28] sm:$0xff]
      %v440 = vld [vmem:[%s433 + $0x30] sm:$0xff]
      %v441 = vld [vmem:[%s433 + $0x38] sm:$0xff]
      %v442 = vld [vmem:[%s433 + $0x40] sm:$0xff]
      %v443 = vld [vmem:[%s433 + $0x48] sm:$0xff]
      %v444 = vld [vmem:[%s433 + $0x50] sm:$0xff]
      %v445 = vld [vmem:[%s433 + $0x58] sm:$0xff]
      %v446 = vld [vmem:[%s433 + $0x60] sm:$0xff]
      %v447 = vld [vmem:[%s433 + $0x68] sm:$0xff]
      %v448 = vld [vmem:[%s433 + $0x70] sm:$0xff]
      %v449 = vld [vmem:[%s433 + $0x78] sm:$0xff]
      %450 = vmatprep.subr.mxu0 0.0
      %451 = vmatpush1.msra.mxu0 %v434
      %452 = vmatprep.subr.mxu0 0.0
      %453 = vmatpush1.msra.mxu0 %v435
      %454 = vmatprep.subr.mxu0 0.0
      %455 = vmatpush1.msra.mxu0 %v436
      %456 = vmatprep.subr.mxu0 0.0
      %457 = vmatpush1.msra.mxu0 %v437
      %458 = vmatprep.subr.mxu0 0.0
      %459 = vmatpush1.msra.mxu0 %v438
      %460 = vmatprep.subr.mxu0 0.0
      %461 = vmatpush1.msra.mxu0 %v439
      %462 = vmatprep.subr.mxu0 0.0
      %463 = vmatpush1.msra.mxu0 %v440
      %464 = vmatprep.subr.mxu0 0.0
      %465 = vmatpush1.msra.mxu0 %v441
      %466 = vmatprep.subr.mxu0 0.0
      %467 = vmatpush1.msra.mxu0 %v442
      %468 = vmatprep.subr.mxu0 0.0
      %469 = vmatpush1.msra.mxu0 %v443
      %470 = vmatprep.subr.mxu0 0.0
      %471 = vmatpush1.msra.mxu0 %v444
      %472 = vmatprep.subr.mxu0 0.0
      %473 = vmatpush1.msra.mxu0 %v445
      %474 = vmatprep.subr.mxu0 0.0
      %475 = vmatpush1.msra.mxu0 %v446
      %476 = vmatprep.subr.mxu0 0.0
      %477 = vmatpush1.msra.mxu0 %v447
      %478 = vmatprep.subr.mxu0 0.0
      %479 = vmatpush1.msra.mxu0 %v448
      %480 = vmatprep.subr.mxu0 0.0
      %481 = vmatpush1.msra.mxu0 %v449
      %482 = vmatprep.subr.mxu0 0.0
      %483 = vmatpush1.msra.mxu0 0.0
      %484 = vmatprep.subr.mxu0 0.0
      %485 = vmatpush1.msra.mxu0 0.0
      %486 = vmatprep.subr.mxu0 0.0
      %487 = vmatpush1.msra.mxu0 0.0
      %488 = vmatprep.subr.mxu0 0.0
      %489 = vmatpush1.msra.mxu0 0.0
      %490 = vmatprep.subr.mxu0 0.0
      %491 = vmatpush1.msra.mxu0 0.0
      %492 = vmatprep.subr.mxu0 0.0
      %493 = vmatpush1.msra.mxu0 0.0
      %494 = vmatprep.subr.mxu0 0.0
      %495 = vmatpush1.msra.mxu0 0.0
      %496 = vmatprep.subr.mxu0 0.0
      %497 = vmatpush1.msra.mxu0 0.0
      %498 = vmatprep.subr.mxu0 0.0
      %499 = vmatpush1.msra.mxu0 0.0
      %500 = vmatprep.subr.mxu0 0.0
      %501 = vmatpush1.msra.mxu0 0.0
      %502 = vmatprep.subr.mxu0 0.0
      %503 = vmatpush1.msra.mxu0 0.0
      %504 = vmatprep.subr.mxu0 0.0
      %505 = vmatpush1.msra.mxu0 0.0
      %506 = vmatprep.subr.mxu0 0.0
      %507 = vmatpush1.msra.mxu0 0.0
      %508 = vmatprep.subr.mxu0 0.0
      %509 = vmatpush1.msra.mxu0 0.0
      %510 = vmatprep.subr.mxu0 0.0
      %511 = vmatpush1.msra.mxu0 0.0
      %512 = vmatprep.subr.mxu0 0.0
      %513 = vmatpush1.msra.mxu0 0.0
      %514 = vmatprep.mubr.f32.mxu0 0.0
      %515 = vmatmul.mubr.f32.gmra.mrb[0].mxu0 %v431
      %v516 = vpop.f32.mrb[0].mxu0
      %v517 = vadd.f32 0.0, %v516
      %v518 = vpop.f32.mrb[0].mxu0
      %519 = vmatprep.mubr.f32.mxu0 0.0
      %520 = vmatmul.mubr.f32.gmra.mrb[0].mxu0 %v432
      %v521 = vpop.f32.mrb[0].mxu0
      %v522 = vadd.f32 0.0, %v521
      %v523 = vpop.f32.mrb[0].mxu0
      %524 = vdwg.mxu0
      %v525 = vadd.f32 %v429, %v517
      %v526 = vadd.f32 %v430, %v522
      %v527 = vmax.f32 %v525, 0.0
      %v528 = vmax.f32 %v526, 0.0
      %529 = vst [vmem:[#allocation3 + $0x1] sm:$0xff] %v527
      %530 = vst [vmem:[#allocation3 + $0x9] sm:$0xff] %v528
      %v531 = vld [vmem:[%s4] sm:$0x1]
      %v533 = vlaneseq
      %v534 = vshrl.u32 %v533, 7
      %v535 = vsub.s32 0, %v534
      %v536 = vrot.slane %v531, %v535
      %v538 = vld [vmem:[#allocation3] sm:$0xff]
      %v539 = vld [vmem:[#allocation3 + $0x8] sm:$0xff]
      %v540 = vld [vmem:[%s3] sm:$0xff]
      %v541 = vld [vmem:[%s3 + $0x8] sm:$0xff]
      %v542 = vld [vmem:[%s3 + $0x10] sm:$0xff]
      %v543 = vld [vmem:[%s3 + $0x18] sm:$0xff]
      %v544 = vld [vmem:[%s3 + $0x20] sm:$0xff]
      %v545 = vld [vmem:[%s3 + $0x28] sm:$0xff]
      %v546 = vld [vmem:[%s3 + $0x30] sm:$0xff]
      %v547 = vld [vmem:[%s3 + $0x38] sm:$0xff]
      %v548 = vld [vmem:[%s3 + $0x40] sm:$0xff]
      %v549 = vld [vmem:[%s3 + $0x48] sm:$0xff]
      %v550 = vld [vmem:[%s3 + $0x50] sm:$0xff]
      %v551 = vld [vmem:[%s3 + $0x58] sm:$0xff]
      %v552 = vld [vmem:[%s3 + $0x60] sm:$0xff]
      %v553 = vld [vmem:[%s3 + $0x68] sm:$0xff]
      %v554 = vld [vmem:[%s3 + $0x70] sm:$0xff]
      %v555 = vld [vmem:[%s3 + $0x78] sm:$0xff]
      %556 = vmatprep.subr.mxu0 0.0
      %557 = vmatpush1.msra.mxu0 %v540
      %558 = vmatprep.subr.mxu0 0.0
      %559 = vmatpush1.msra.mxu0 %v541
      %560 = vmatprep.subr.mxu0 0.0
      %561 = vmatpush1.msra.mxu0 %v542
      %562 = vmatprep.subr.mxu0 0.0
      %563 = vmatpush1.msra.mxu0 %v543
      %564 = vmatprep.subr.mxu0 0.0
      %565 = vmatpush1.msra.mxu0 %v544
      %566 = vmatprep.subr.mxu0 0.0
      %567 = vmatpush1.msra.mxu0 %v545
      %568 = vmatprep.subr.mxu0 0.0
      %569 = vmatpush1.msra.mxu0 %v546
      %570 = vmatprep.subr.mxu0 0.0
      %571 = vmatpush1.msra.mxu0 %v547
      %572 = vmatprep.subr.mxu0 0.0
      %573 = vmatpush1.msra.mxu0 %v548
      %574 = vmatprep.subr.mxu0 0.0
      %575 = vmatpush1.msra.mxu0 %v549
      %576 = vmatprep.subr.mxu0 0.0
      %577 = vmatpush1.msra.mxu0 %v550
      %578 = vmatprep.subr.mxu0 0.0
      %579 = vmatpush1.msra.mxu0 %v551
      %580 = vmatprep.subr.mxu0 0.0
      %581 = vmatpush1.msra.mxu0 %v552
      %582 = vmatprep.subr.mxu0 0.0
      %583 = vmatpush1.msra.mxu0 %v553
      %584 = vmatprep.subr.mxu0 0.0
      %585 = vmatpush1.msra.mxu0 %v554
      %586 = vmatprep.subr.mxu0 0.0
      %587 = vmatpush1.msra.mxu0 %v555
      %588 = vmatprep.subr.mxu0 0.0
      %589 = vmatpush1.msra.mxu0 0.0
      %590 = vmatprep.subr.mxu0 0.0
      %591 = vmatpush1.msra.mxu0 0.0
      %592 = vmatprep.subr.mxu0 0.0
      %593 = vmatpush1.msra.mxu0 0.0
      %594 = vmatprep.subr.mxu0 0.0
      %595 = vmatpush1.msra.mxu0 0.0
      %596 = vmatprep.subr.mxu0 0.0
      %597 = vmatpush1.msra.mxu0 0.0
      %598 = vmatprep.subr.mxu0 0.0
      %599 = vmatpush1.msra.mxu0 0.0
      %600 = vmatprep.subr.mxu0 0.0
      %601 = vmatpush1.msra.mxu0 0.0
      %602 = vmatprep.subr.mxu0 0.0
      %603 = vmatpush1.msra.mxu0 0.0
      %604 = vmatprep.subr.mxu0 0.0
      %605 = vmatpush1.msra.mxu0 0.0
      %606 = vmatprep.subr.mxu0 0.0
      %607 = vmatpush1.msra.mxu0 0.0
      %608 = vmatprep.subr.mxu0 0.0
      %609 = vmatpush1.msra.mxu0 0.0
      %610 = vmatprep.subr.mxu0 0.0
      %611 = vmatpush1.msra.mxu0 0.0
      %612 = vmatprep.subr.mxu0 0.0
      %613 = vmatpush1.msra.mxu0 0.0
      %614 = vmatprep.subr.mxu0 0.0
      %615 = vmatpush1.msra.mxu0 0.0
      %616 = vmatprep.subr.mxu0 0.0
      %617 = vmatpush1.msra.mxu0 0.0
      %618 = vmatprep.subr.mxu0 0.0
      %619 = vmatpush1.msra.mxu0 0.0
      %620 = vmatprep.mubr.f32.mxu0 0.0
      %621 = vmatmul.mubr.f32.gmra.mrb[0].mxu0 %v538
      %v622 = vpop.f32.mrb[0].mxu0
      %v623 = vadd.f32 0.0, %v622
      %v624 = vpop.f32.mrb[0].mxu0
      %625 = vmatprep.mubr.f32.mxu0 0.0
      %626 = vmatmul.mubr.f32.gmra.mrb[0].mxu0 %v539
      %v627 = vpop.f32.mrb[0].mxu0
      %v628 = vadd.f32 0.0, %v627
      %v629 = vpop.f32.mrb[0].mxu0
      %630 = vdwg.mxu0
      %v631 = vadd.f32 %v536, %v623
      %v632 = vadd.f32 %v536, %v628
      %v633 = vld [vmem:[#allocation3 + $0x1] sm:$0xff]
      %v634 = vld [vmem:[#allocation3 + $0x9] sm:$0xff]
      %s635 = scalar_lea.vmem %s3, 128
      %v636 = vld [vmem:[%s635] sm:$0xff]
      %v637 = vld [vmem:[%s635 + $0x8] sm:$0xff]
      %v638 = vld [vmem:[%s635 + $0x10] sm:$0xff]
      %v639 = vld [vmem:[%s635 + $0x18] sm:$0xff]
      %v640 = vld [vmem:[%s635 + $0x20] sm:$0xff]
      %v641 = vld [vmem:[%s635 + $0x28] sm:$0xff]
      %v642 = vld [vmem:[%s635 + $0x30] sm:$0xff]
      %v643 = vld [vmem:[%s635 + $0x38] sm:$0xff]
      %v644 = vld [vmem:[%s635 + $0x40] sm:$0xff]
      %v645 = vld [vmem:[%s635 + $0x48] sm:$0xff]
      %v646 = vld [vmem:[%s635 + $0x50] sm:$0xff]
      %v647 = vld [vmem:[%s635 + $0x58] sm:$0xff]
      %v648 = vld [vmem:[%s635 + $0x60] sm:$0xff]
      %v649 = vld [vmem:[%s635 + $0x68] sm:$0xff]
      %v650 = vld [vmem:[%s635 + $0x70] sm:$0xff]
      %v651 = vld [vmem:[%s635 + $0x78] sm:$0xff]
      %652 = vmatprep.subr.mxu0 0.0
      %653 = vmatpush1.msra.mxu0 %v636
      %654 = vmatprep.subr.mxu0 0.0
      %655 = vmatpush1.msra.mxu0 %v637
      %656 = vmatprep.subr.mxu0 0.0
      %657 = vmatpush1.msra.mxu0 %v638
      %658 = vmatprep.subr.mxu0 0.0
      %659 = vmatpush1.msra.mxu0 %v639
      %660 = vmatprep.subr.mxu0 0.0
      %661 = vmatpush1.msra.mxu0 %v640
      %662 = vmatprep.subr.mxu0 0.0
      %663 = vmatpush1.msra.mxu0 %v641
      %664 = vmatprep.subr.mxu0 0.0
      %665 = vmatpush1.msra.mxu0 %v642
      %666 = vmatprep.subr.mxu0 0.0
      %667 = vmatpush1.msra.mxu0 %v643
      %668 = vmatprep.subr.mxu0 0.0
      %669 = vmatpush1.msra.mxu0 %v644
      %670 = vmatprep.subr.mxu0 0.0
      %671 = vmatpush1.msra.mxu0 %v645
      %672 = vmatprep.subr.mxu0 0.0
      %673 = vmatpush1.msra.mxu0 %v646
      %674 = vmatprep.subr.mxu0 0.0
      %675 = vmatpush1.msra.mxu0 %v647
      %676 = vmatprep.subr.mxu0 0.0
      %677 = vmatpush1.msra.mxu0 %v648
      %678 = vmatprep.subr.mxu0 0.0
      %679 = vmatpush1.msra.mxu0 %v649
      %680 = vmatprep.subr.mxu0 0.0
      %681 = vmatpush1.msra.mxu0 %v650
      %682 = vmatprep.subr.mxu0 0.0
      %683 = vmatpush1.msra.mxu0 %v651
      %684 = vmatprep.subr.mxu0 0.0
      %685 = vmatpush1.msra.mxu0 0.0
      %686 = vmatprep.subr.mxu0 0.0
      %687 = vmatpush1.msra.mxu0 0.0
      %688 = vmatprep.subr.mxu0 0.0
      %689 = vmatpush1.msra.mxu0 0.0
      %690 = vmatprep.subr.mxu0 0.0
      %691 = vmatpush1.msra.mxu0 0.0
      %692 = vmatprep.subr.mxu0 0.0
      %693 = vmatpush1.msra.mxu0 0.0
      %694 = vmatprep.subr.mxu0 0.0
      %695 = vmatpush1.msra.mxu0 0.0
      %696 = vmatprep.subr.mxu0 0.0
      %697 = vmatpush1.msra.mxu0 0.0
      %698 = vmatprep.subr.mxu0 0.0
      %699 = vmatpush1.msra.mxu0 0.0
      %700 = vmatprep.subr.mxu0 0.0
      %701 = vmatpush1.msra.mxu0 0.0
      %702 = vmatprep.subr.mxu0 0.0
      %703 = vmatpush1.msra.mxu0 0.0
      %704 = vmatprep.subr.mxu0 0.0
      %705 = vmatpush1.msra.mxu0 0.0
      %706 = vmatprep.subr.mxu0 0.0
      %707 = vmatpush1.msra.mxu0 0.0
      %708 = vmatprep.subr.mxu0 0.0
      %709 = vmatpush1.msra.mxu0 0.0
      %710 = vmatprep.subr.mxu0 0.0
      %711 = vmatpush1.msra.mxu0 0.0
      %712 = vmatprep.subr.mxu0 0.0
      %713 = vmatpush1.msra.mxu0 0.0
      %714 = vmatprep.subr.mxu0 0.0
      %715 = vmatpush1.msra.mxu0 0.0
      %716 = vmatprep.mubr.f32.mxu0 0.0
      %717 = vmatmul.mubr.f32.gmra.mrb[0].mxu0 %v633
      %v718 = vpop.f32.mrb[0].mxu0
      %v719 = vadd.f32 0.0, %v718
      %v720 = vpop.f32.mrb[0].mxu0
      %721 = vmatprep.mubr.f32.mxu0 0.0
      %722 = vmatmul.mubr.f32.gmra.mrb[0].mxu0 %v634
      %v723 = vpop.f32.mrb[0].mxu0
      %v724 = vadd.f32 0.0, %v723
      %v725 = vpop.f32.mrb[0].mxu0
      %726 = vdwg.mxu0
      %v727 = vadd.f32 %v631, %v719
      %v728 = vadd.f32 %v632, %v724
      %v729 = vld [vmem:[#allocation3 + $0x2] sm:$0xff]
      %v730 = vld [vmem:[#allocation3 + $0xa] sm:$0xff]
      %s731 = scalar_lea.vmem %s3, 256
      %v732 = vld [vmem:[%s731] sm:$0xff]
      %v733 = vld [vmem:[%s731 + $0x8] sm:$0xff]
      %v734 = vld [vmem:[%s731 + $0x10] sm:$0xff]
      %v735 = vld [vmem:[%s731 + $0x18] sm:$0xff]
      %v736 = vld [vmem:[%s731 + $0x20] sm:$0xff]
      %v737 = vld [vmem:[%s731 + $0x28] sm:$0xff]
      %v738 = vld [vmem:[%s731 + $0x30] sm:$0xff]
      %v739 = vld [vmem:[%s731 + $0x38] sm:$0xff]
      %v740 = vld [vmem:[%s731 + $0x40] sm:$0xff]
      %v741 = vld [vmem:[%s731 + $0x48] sm:$0xff]
      %v742 = vld [vmem:[%s731 + $0x50] sm:$0xff]
      %v743 = vld [vmem:[%s731 + $0x58] sm:$0xff]
      %v744 = vld [vmem:[%s731 + $0x60] sm:$0xff]
      %v745 = vld [vmem:[%s731 + $0x68] sm:$0xff]
      %v746 = vld [vmem:[%s731 + $0x70] sm:$0xff]
      %v747 = vld [vmem:[%s731 + $0x78] sm:$0xff]
      %748 = vmatprep.subr.mxu0 0.0
      %749 = vmatpush1.msra.mxu0 %v732
      %750 = vmatprep.subr.mxu0 0.0
      %751 = vmatpush1.msra.mxu0 %v733
      %752 = vmatprep.subr.mxu0 0.0
      %753 = vmatpush1.msra.mxu0 %v734
      %754 = vmatprep.subr.mxu0 0.0
      %755 = vmatpush1.msra.mxu0 %v735
      %756 = vmatprep.subr.mxu0 0.0
      %757 = vmatpush1.msra.mxu0 %v736
      %758 = vmatprep.subr.mxu0 0.0
      %759 = vmatpush1.msra.mxu0 %v737
      %760 = vmatprep.subr.mxu0 0.0
      %761 = vmatpush1.msra.mxu0 %v738
      %762 = vmatprep.subr.mxu0 0.0
      %763 = vmatpush1.msra.mxu0 %v739
      %764 = vmatprep.subr.mxu0 0.0
      %765 = vmatpush1.msra.mxu0 %v740
      %766 = vmatprep.subr.mxu0 0.0
      %767 = vmatpush1.msra.mxu0 %v741
      %768 = vmatprep.subr.mxu0 0.0
      %769 = vmatpush1.msra.mxu0 %v742
      %770 = vmatprep.subr.mxu0 0.0
      %771 = vmatpush1.msra.mxu0 %v743
      %772 = vmatprep.subr.mxu0 0.0
      %773 = vmatpush1.msra.mxu0 %v744
      %774 = vmatprep.subr.mxu0 0.0
      %775 = vmatpush1.msra.mxu0 %v745
      %776 = vmatprep.subr.mxu0 0.0
      %777 = vmatpush1.msra.mxu0 %v746
      %778 = vmatprep.subr.mxu0 0.0
      %779 = vmatpush1.msra.mxu0 %v747
      %780 = vmatprep.subr.mxu0 0.0
      %781 = vmatpush1.msra.mxu0 0.0
      %782 = vmatprep.subr.mxu0 0.0
      %783 = vmatpush1.msra.mxu0 0.0
      %784 = vmatprep.subr.mxu0 0.0
      %785 = vmatpush1.msra.mxu0 0.0
      %786 = vmatprep.subr.mxu0 0.0
      %787 = vmatpush1.msra.mxu0 0.0
      %788 = vmatprep.subr.mxu0 0.0
      %789 = vmatpush1.msra.mxu0 0.0
      %790 = vmatprep.subr.mxu0 0.0
      %791 = vmatpush1.msra.mxu0 0.0
      %792 = vmatprep.subr.mxu0 0.0
      %793 = vmatpush1.msra.mxu0 0.0
      %794 = vmatprep.subr.mxu0 0.0
      %795 = vmatpush1.msra.mxu0 0.0
      %796 = vmatprep.subr.mxu0 0.0
      %797 = vmatpush1.msra.mxu0 0.0
      %798 = vmatprep.subr.mxu0 0.0
      %799 = vmatpush1.msra.mxu0 0.0
      %800 = vmatprep.subr.mxu0 0.0
      %801 = vmatpush1.msra.mxu0 0.0
      %802 = vmatprep.subr.mxu0 0.0
      %803 = vmatpush1.msra.mxu0 0.0
      %804 = vmatprep.subr.mxu0 0.0
      %805 = vmatpush1.msra.mxu0 0.0
      %806 = vmatprep.subr.mxu0 0.0
      %807 = vmatpush1.msra.mxu0 0.0
      %808 = vmatprep.subr.mxu0 0.0
      %809 = vmatpush1.msra.mxu0 0.0
      %810 = vmatprep.subr.mxu0 0.0
      %811 = vmatpush1.msra.mxu0 0.0
      %812 = vmatprep.mubr.f32.mxu0 0.0
      %813 = vmatmul.mubr.f32.gmra.mrb[0].mxu0 %v729
      %v814 = vpop.f32.mrb[0].mxu0
      %v815 = vadd.f32 0.0, %v814
      %v816 = vpop.f32.mrb[0].mxu0
      %817 = vmatprep.mubr.f32.mxu0 0.0
      %818 = vmatmul.mubr.f32.gmra.mrb[0].mxu0 %v730
      %v819 = vpop.f32.mrb[0].mxu0
      %v820 = vadd.f32 0.0, %v819
      %v821 = vpop.f32.mrb[0].mxu0
      %822 = vdwg.mxu0
      %v823 = vadd.f32 %v727, %v815
      %v824 = vadd.f32 %v728, %v820
      %v825 = vadd.f32 %v823, %v229
      %v826 = vadd.f32 %v824, %v230
      %v827 = vmax.f32 %v825, 0.0
      %v828 = vmax.f32 %v826, 0.0
      %829 = vst [vmem:[%s224] sm:$0xff] %v827
      %830 = vst [vmem:[%s224 + $0x8] sm:$0xff] %v828
      %p831 = scmp.lt.s32.totalorder %s16, 1
      %s832 = scalar_select %p831, %s16, 1
      %s833 = smul.addr %s832, 2
      %s834 = smul.addr %s833, 8
      %s835 = scalar_lea.vmem %s5, %s834
      // Predicated region
      $region41: #{basic_block_forward.1} parent=39 // pred_check
        %p836 = pneg %p144
      $region42: #{basic_block_forward.1} parent=39 // pred_check_branch
        %838 = sbr.rel (%p836) target = $region44
      $region43: #{basic_block_forward.1} parent=39 // pred_region
        _
      $region44: #{basic_block_forward.1} parent=39 // pred_fallthru
        _
    $region40: #{basic_block_forward.1} parent=5 // pred_fallthru
      _
    %p839 = scmp.le.s32.totalorder 2, %s11
    // Predicated region
    $region45: #{basic_block_forward.1} parent=5 // pred_check
      %p840 = pneg %p839
    $region46: #{basic_block_forward.1} parent=5 // pred_check_branch
      %842 = sbr.rel (%p840) target = $region48
    $region47: #{basic_block_forward.1} parent=5 // pred_region
      %s843 = ssub.s32 %s11, 2
      // Predicated region
      $region49: #{basic_block_forward.1} parent=47 // pred_check
        %p844 = pneg %p150
      $region50: #{basic_block_forward.1} parent=47 // pred_check_branch
        %846 = sbr.rel (%p844) target = $region52
      $region51: #{basic_block_forward.1} parent=47 // pred_region
        %p847 = scmp.lt.s32.totalorder %s17, 1
        %s848 = scalar_select %p847, %s17, 1
        %s849 = smul.addr %s848, 2
        %s850 = smul.addr %s849, 8
        %s851 = scalar_lea.vmem %s5, %s850
      $region52: #{basic_block_forward.1} parent=47 // pred_fallthru
        _
    $region48: #{basic_block_forward.1} parent=5 // pred_fallthru
      _
  $region6: #{basic_block_forward.1} parent=0 // loop_footer
    %s15 = sadd.s32 1, %s11
  $region7: #{basic_block_forward.1} parent=0 // loop_footer_branch
    %10 = sbr.rel target = $region3
  $region8: #{basic_block_forward.1} parent=0 // loop_exit
    _

</llo_original>
